<compile_context>
chip_gen: v5e
topology: v5e:2x2
jax: 0.10.0
libtpu: 0.0.40
codegen_flags: <defaults>
</compile_context>

<pallas_src>
import functools

import jax
import jax.numpy as jnp
from jax.experimental import pallas as pl
from jax.experimental.pallas import tpu as pltpu

LN_EPS = 1e-5  # torch.nn.LayerNorm default


def _round_up(x, m):
    return ((x + m - 1) // m) * m


def _prenorm_kernel(x_ref, gamma_ref, beta_ref, w_ref, b_ref, o_ref, y_ref):
    """Fused LayerNorm(last dim) + Linear.

    x_ref:     (tm, D)   input rows
    gamma_ref: (1, D)    LayerNorm weight
    beta_ref:  (1, D)    LayerNorm bias
    w_ref:     (D, tn)   Linear weight tile (already transposed to (in, out))
    b_ref:     (1, tn)   Linear bias tile
    o_ref:     (tm, tn)  output tile
    y_ref:     (tm, D)   VMEM scratch: normalized rows, matmul-input dtype
    """
    # LayerNorm for this row tile is computed only on the first column tile
    # and cached in VMEM; subsequent j tiles reuse it.
    @pl.when(pl.program_id(1) == 0)
    def _():
        x = x_ref[...].astype(jnp.float32)
        mean = jnp.mean(x, axis=-1, keepdims=True)
        xc = x - mean
        var = jnp.mean(xc * xc, axis=-1, keepdims=True)
        inv = jax.lax.rsqrt(var + LN_EPS)
        y = xc * inv * gamma_ref[...].astype(jnp.float32) \
            + beta_ref[...].astype(jnp.float32)
        # Store in the weight's native dtype so the MXU runs bf16xbf16 (or
        # f32xf32) with f32 accumulation — no blanket f32 upcast of the weight.
        y_ref[...] = y.astype(y_ref.dtype)

    out = jnp.dot(y_ref[...], w_ref[...], preferred_element_type=jnp.float32)
    out = out + b_ref[...].astype(jnp.float32)
    o_ref[...] = out.astype(o_ref.dtype)


@functools.partial(jax.jit, static_argnames=("tm", "tn"))
def pre_norm(x, gamma, beta, w, b, *, tm=256, tn=512):
    """x: (B, N, D); gamma/beta: (D,); w: (D, H); b: (H,) -> (B, N, H)."""
    B, N, D = x.shape
    H = w.shape[1]
    M = B * N

    # Sublane alignment for the row tile: 8 for 4-byte dtypes, 16 for 2-byte.
    row_align = max(8, 32 // jnp.dtype(x.dtype).itemsize)

    # Clamp tiles for small problems, then pad M / H up to the tile grid.
    tm_eff = min(tm, _round_up(M, row_align))
    tm_eff = _round_up(tm_eff, row_align)
    tn_eff = min(tn, _round_up(H, 128))
    tn_eff = _round_up(tn_eff, 128)

    M_pad = _round_up(M, tm_eff)
    H_pad = _round_up(H, tn_eff)

    x2 = x.reshape(M, D)
    if M_pad != M:
        x2 = jnp.pad(x2, ((0, M_pad - M), (0, 0)))
    w2 = w
    b2 = b
    if H_pad != H:
        w2 = jnp.pad(w2, ((0, 0), (0, H_pad - H)))
        b2 = jnp.pad(b2, ((0, H_pad - H),))

    gamma2 = gamma.reshape(1, D)
    beta2 = beta.reshape(1, D)
    b2 = b2.reshape(1, H_pad)

    grid = (M_pad // tm_eff, H_pad // tn_eff)

    out = pl.pallas_call(
        _prenorm_kernel,
        out_shape=jax.ShapeDtypeStruct((M_pad, H_pad), x.dtype),
        grid_spec=pltpu.PrefetchScalarGridSpec(
            num_scalar_prefetch=0,
            grid=grid,
            in_specs=[
                pl.BlockSpec((tm_eff, D), lambda i, j: (i, 0)),   # x rows
                pl.BlockSpec((1, D), lambda i, j: (0, 0)),        # gamma
                pl.BlockSpec((1, D), lambda i, j: (0, 0)),        # beta
                pl.BlockSpec((D, tn_eff), lambda i, j: (0, j)),   # linear weight tile
                pl.BlockSpec((1, tn_eff), lambda i, j: (0, j)),   # linear bias tile
            ],
            out_specs=pl.BlockSpec((tm_eff, tn_eff), lambda i, j: (i, j)),
            scratch_shapes=[pltpu.VMEM((tm_eff, D), w.dtype)],    # cached normed rows
        ),
        compiler_params=pltpu.CompilerParams(
            # Rows shard across cores; column axis carries the LN cache, so
            # it must run in order per row tile -> "arbitrary".
            dimension_semantics=("parallel", "arbitrary"),
            vmem_limit_bytes=48 * 1024 * 1024,
        ),
    )(x2, gamma2, beta2, w2, b2)

    out = out[:M, :H]
    return out.reshape(B, N, H)


def _reference(x, gamma, beta, w, b):
    x32 = x.astype(jnp.float32)
    mean = jnp.mean(x32, axis=-1, keepdims=True)
    var = jnp.mean((x32 - mean) ** 2, axis=-1, keepdims=True)
    y = (x32 - mean) / jnp.sqrt(var + LN_EPS) * gamma + beta
    return jnp.einsum("bnd,dh->bnh", y, w.astype(jnp.float32)) + b


if __name__ == "__main__":
    key = jax.random.PRNGKey(0)
    # Small token grid; H deliberately not a multiple of 128 so the padding
    # path (pad -> lane-dense kernel -> slice back) is exercised.
    B, N, D, H = 2, 16, 128, 96

    kx, kg, kb, kw, kbias = jax.random.split(key, 5)
    x = jax.random.normal(kx, (B, N, D), dtype=jnp.float32)

    # Deterministic parameter init (synthetic; LayerNorm default is ones/zeros,
    # perturbed slightly so the affine part is exercised).
    gamma = jnp.ones((D,), jnp.float32) + 0.01 * jax.random.normal(kg, (D,))
    beta = 0.01 * jax.random.normal(kb, (D,))
    w = jax.random.normal(kw, (D, H), dtype=jnp.float32) * (1.0 / jnp.sqrt(D))
    b = 0.01 * jax.random.normal(kbias, (H,))

    # TODO(synk): the reference module's `fn` is an arbitrary callable; it is
    # instantiated here as nn.Linear(dim, hidden), the common use in this FPN.
    out = pre_norm(x, gamma, beta, w, b)
    jax.block_until_ready(out)

    ref = _reference(x, gamma, beta, w, b)
    assert out.shape == (B, N, H)
    assert jnp.allclose(out, ref, atol=1e-4, rtol=1e-4), "mismatch vs reference"

    print("KERNEL_OK")
</pallas_src>

<mosaic_0001>
module attributes {stable_mosaic.version = 11 : i64} {
  func.func @_prenorm_kernel(%arg0: i32, %arg1: i32, %arg2: memref<32x128xf32, #tpu.memory_space<vmem>>, %arg3: memref<1x128xf32, #tpu.memory_space<vmem>>, %arg4: memref<1x128xf32, #tpu.memory_space<vmem>>, %arg5: memref<128x128xf32, #tpu.memory_space<vmem>>, %arg6: memref<1x128xf32, #tpu.memory_space<vmem>>, %arg7: memref<32x128xf32, #tpu.memory_space<vmem>>, %arg8: memref<32x128xf32, #tpu.memory_space<vmem>>) attributes {dimension_semantics = [#tpu.dimension_semantics<parallel>, #tpu.dimension_semantics<arbitrary>], iteration_bounds = array<i64: 1, 1>, scalar_prefetch = 0 : i64, scratch_operands = 1 : i64, tpu.core_type = #tpu.core_type<tc>, window_params = [{transform_indices = @transform_0, window_bounds = array<i64: 32, 128>}, {pipeline_mode = #tpu.pipeline_mode<synchronous>, transform_indices = @transform_1, window_bounds = array<i64: 1, 128>}, {pipeline_mode = #tpu.pipeline_mode<synchronous>, transform_indices = @transform_2, window_bounds = array<i64: 1, 128>}, {transform_indices = @transform_3, window_bounds = array<i64: 128, 128>}, {transform_indices = @transform_4, window_bounds = array<i64: 1, 128>}, {transform_indices = @transform_5, window_bounds = array<i64: 32, 128>}]} {
    %c0_i32 = arith.constant 0 : i32
    %0 = arith.cmpi eq, %arg1, %c0_i32 : i32
    %1 = arith.extui %0 : i1 to i32
    %c0_i32_0 = arith.constant 0 : i32
    %2 = arith.cmpi ne, %1, %c0_i32_0 : i32
    scf.if %2 {
      %c0_8 = arith.constant 0 : index
      %c0_9 = arith.constant 0 : index
      %10 = vector.load %arg2[%c0_8, %c0_9] : memref<32x128xf32, #tpu.memory_space<vmem>>, vector<32x128xf32>
      %cst_10 = arith.constant dense<0.000000e+00> : vector<32xf32>
      %11 = vector.multi_reduction <add>, %10, %cst_10 [1] : vector<32x128xf32> to vector<32xf32>
      %12 = vector.shape_cast %11 : vector<32xf32> to vector<32x1xf32>
      %cst_11 = arith.constant 1.280000e+02 : f32
      %13 = vector.broadcast %cst_11 : f32 to vector<32x1xf32>
      %14 = arith.divf %12, %13 : vector<32x1xf32>
      %15 = vector.broadcast %14 : vector<32x1xf32> to vector<32x128xf32>
      %16 = arith.subf %10, %15 : vector<32x128xf32>
      %17 = arith.mulf %16, %16 : vector<32x128xf32>
      %cst_12 = arith.constant dense<0.000000e+00> : vector<32xf32>
      %18 = vector.multi_reduction <add>, %17, %cst_12 [1] : vector<32x128xf32> to vector<32xf32>
      %19 = vector.shape_cast %18 : vector<32xf32> to vector<32x1xf32>
      %cst_13 = arith.constant 1.280000e+02 : f32
      %20 = vector.broadcast %cst_13 : f32 to vector<32x1xf32>
      %21 = arith.divf %19, %20 : vector<32x1xf32>
      %cst_14 = arith.constant 9.99999974E-6 : f32
      %22 = vector.broadcast %cst_14 : f32 to vector<32x1xf32>
      %23 = arith.addf %21, %22 : vector<32x1xf32>
      %24 = math.rsqrt %23 : vector<32x1xf32>
      %25 = vector.broadcast %24 : vector<32x1xf32> to vector<32x128xf32>
      %26 = arith.mulf %16, %25 : vector<32x128xf32>
      %c0_15 = arith.constant 0 : index
      %c0_16 = arith.constant 0 : index
      %27 = vector.load %arg3[%c0_15, %c0_16] : memref<1x128xf32, #tpu.memory_space<vmem>>, vector<1x128xf32>
      %28 = vector.broadcast %27 : vector<1x128xf32> to vector<32x128xf32>
      %29 = arith.mulf %26, %28 : vector<32x128xf32>
      %c0_17 = arith.constant 0 : index
      %c0_18 = arith.constant 0 : index
      %30 = vector.load %arg4[%c0_17, %c0_18] : memref<1x128xf32, #tpu.memory_space<vmem>>, vector<1x128xf32>
      %31 = vector.broadcast %30 : vector<1x128xf32> to vector<32x128xf32>
      %32 = arith.addf %29, %31 : vector<32x128xf32>
      %c0_19 = arith.constant 0 : index
      %c0_20 = arith.constant 0 : index
      %33 = vector.load %arg8[%c0_19, %c0_20] : memref<32x128xf32, #tpu.memory_space<vmem>>, vector<32x128xf32>
      tpu.vector_store %arg8[%c0_19, %c0_20], %32 {strides = array<i32>} : memref<32x128xf32, #tpu.memory_space<vmem>>, vector<32x128xf32>,
    } else {
    }
    %c0 = arith.constant 0 : index
    %c0_1 = arith.constant 0 : index
    %3 = vector.load %arg8[%c0, %c0_1] : memref<32x128xf32, #tpu.memory_space<vmem>>, vector<32x128xf32>
    %c0_2 = arith.constant 0 : index
    %c0_3 = arith.constant 0 : index
    %4 = vector.load %arg5[%c0_2, %c0_3] : memref<128x128xf32, #tpu.memory_space<vmem>>, vector<128x128xf32>
    %cst = arith.constant dense<0.000000e+00> : vector<32x128xf32>
    %5 = tpu.matmul %3, %4, %cst {dimension_numbers = #tpu.dot_dimension_numbers<[1], [0], [0], [1], [0, 0, 1, 1], [], []>} : vector<32x128xf32>, vector<128x128xf32>, vector<32x128xf32> -> vector<32x128xf32>
    %c0_4 = arith.constant 0 : index
    %c0_5 = arith.constant 0 : index
    %6 = vector.load %arg6[%c0_4, %c0_5] : memref<1x128xf32, #tpu.memory_space<vmem>>, vector<1x128xf32>
    %7 = vector.broadcast %6 : vector<1x128xf32> to vector<32x128xf32>
    %8 = arith.addf %5, %7 : vector<32x128xf32>
    %c0_6 = arith.constant 0 : index
    %c0_7 = arith.constant 0 : index
    %9 = vector.load %arg7[%c0_6, %c0_7] : memref<32x128xf32, #tpu.memory_space<vmem>>, vector<32x128xf32>
    tpu.vector_store %arg7[%c0_6, %c0_7], %8 {strides = array<i32>} : memref<32x128xf32, #tpu.memory_space<vmem>>, vector<32x128xf32>,
    return
  }
  func.func @transform_0(%arg0: i32, %arg1: i32) -> (i32, i32) {
    %c0_i32 = arith.constant 0 : i32
    %c0_i32_0 = arith.constant 0 : i32
    return %arg0, %c0_i32 : i32, i32
  }
  func.func @transform_1(%arg0: i32, %arg1: i32) -> (i32, i32) {
    %c0_i32 = arith.constant 0 : i32
    %c0_i32_0 = arith.constant 0 : i32
    %c0_i32_1 = arith.constant 0 : i32
    return %c0_i32, %c0_i32_0 : i32, i32
  }
  func.func @transform_2(%arg0: i32, %arg1: i32) -> (i32, i32) {
    %c0_i32 = arith.constant 0 : i32
    %c0_i32_0 = arith.constant 0 : i32
    %c0_i32_1 = arith.constant 0 : i32
    return %c0_i32, %c0_i32_0 : i32, i32
  }
  func.func @transform_3(%arg0: i32, %arg1: i32) -> (i32, i32) {
    %c0_i32 = arith.constant 0 : i32
    %c0_i32_0 = arith.constant 0 : i32
    return %c0_i32, %arg1 : i32, i32
  }
  func.func @transform_4(%arg0: i32, %arg1: i32) -> (i32, i32) {
    %c0_i32 = arith.constant 0 : i32
    %c0_i32_0 = arith.constant 0 : i32
    return %c0_i32, %arg1 : i32, i32
  }
  func.func @transform_5(%arg0: i32, %arg1: i32) -> (i32, i32) {
    %c0_i32 = arith.constant 0 : i32
    return %arg0, %arg1 : i32, i32
  }
}

</mosaic_0001>

<llo_original>
// kernel: pre_norm.1
$region0: #{pre_norm.1}
  #allocation0 [shape = 'u32[]', space=smem, size = 0x4, offset = 0x4, fixed_abs, tag = 'smem constant byte address 0x4 - core index']
  #allocation1 [shape = 'u32[72,128]{1,0:T(1,128)}', space=vmem, size = 0x9000, scoped, tag = 'internal scratch']
  #allocation2 [shape = 'f32[32,128]{1,0:T(8,128)}', space=vmem, size = 0x4000, scoped, tag = 'scratch operand']
  %s0 = inlined_call_operand.vmem [shape: f32[32,128], index: 0, kind: input, shape index: {}]
  %s1 = inlined_call_operand.vmem [shape: f32[1,128], index: 1, kind: input, shape index: {}]
  %s2 = inlined_call_operand.vmem [shape: f32[1,128], index: 2, kind: input, shape index: {}]
  %s3 = inlined_call_operand.vmem [shape: f32[128,128], index: 3, kind: input, shape index: {}]
  %s4 = inlined_call_operand.vmem [shape: f32[1,128], index: 4, kind: input, shape index: {}]
  %s5 = inlined_call_operand.hbm [shape: f32[32,128], index: 5, kind: output, shape index: {}]
  %s6 = sld [smem:[#allocation0]]
  $region34: #{pre_norm.1} parent=0
    _
  %s8 = ssub.s32 1, %s6
  %s9 = scalar_select 0, %s8, %s6
  $region1: #{pre_norm.1} parent=0
    #allocation3 [shape = 'u8[16384]{0}', space=vmem, size = 0x4000, scoped, tag = 'output window, operand 0, single buffered']
    #allocation4 [shape = 's32[1]{0}', space=sflag, size = 0x4, scoped, tag = 'scoped memory for pre_norm.1']
    %10 = vsyncpa [#allocation4], 0
    // Predicated region
    $region2: #{pre_norm.1} parent=1 // pred_check
      _
    $region3: #{pre_norm.1} parent=1 // pred_check_branch
      %12 = sbr.rel (0) target = $region5
    $region4: #{pre_norm.1} parent=1 // pred_region
      _
    $region5: #{pre_norm.1} parent=1 // pred_fallthru
      _
    // Predicated region
    $region6: #{pre_norm.1} parent=1 // pred_check
      _
    $region7: #{pre_norm.1} parent=1 // pred_check_branch
      %14 = sbr.rel (0) target = $region9
    $region8: #{pre_norm.1} parent=1 // pred_region
      _
    $region9: #{pre_norm.1} parent=1 // pred_fallthru
      _
    // Predicated region
    $region10: #{pre_norm.1} parent=1 // pred_check
      _
    $region11: #{pre_norm.1} parent=1 // pred_check_branch
      %16 = sbr.rel (0) target = $region13
    $region12: #{pre_norm.1} parent=1 // pred_region
      _
    $region13: #{pre_norm.1} parent=1 // pred_fallthru
      _
    // Predicated region
    $region14: #{pre_norm.1} parent=1 // pred_check
      _
    $region15: #{pre_norm.1} parent=1 // pred_check_branch
      %18 = sbr.rel (0) target = $region17
    $region16: #{pre_norm.1} parent=1 // pred_region
      _
    $region17: #{pre_norm.1} parent=1 // pred_fallthru
      _
    // Predicated region
    $region18: #{pre_norm.1} parent=1 // pred_check
      _
    $region19: #{pre_norm.1} parent=1 // pred_check_branch
      %20 = sbr.rel (0) target = $region21
    $region20: #{pre_norm.1} parent=1 // pred_region
      _
    $region21: #{pre_norm.1} parent=1 // pred_fallthru
      _
    %p21 = scmp.eq.s32.totalorder 0, 0
    // Predicated region
    $region22: #{pre_norm.1} parent=1 // pred_check
      %p22 = pneg %p21
    $region23: #{pre_norm.1} parent=1 // pred_check_branch
      %24 = sbr.rel (%p22) target = $region25
    $region24: #{pre_norm.1} parent=1 // pred_region
      %v25 = vld [vmem:[%s0] sm:$0xff]
      %v26 = vld [vmem:[%s0 + $0x8] sm:$0xff]
      %v27 = vld [vmem:[%s0 + $0x10] sm:$0xff]
      %v28 = vld [vmem:[%s0 + $0x18] sm:$0xff]
      %29 = vadd.xlane.f32.xlu0 %v25
      %v30 = vpop.xlane.xlu0 %29
      %31 = vadd.xlane.f32.xlu0 %v26
      %v32 = vpop.xlane.xlu0 %31
      %33 = vadd.xlane.f32.xlu0 %v27
      %v34 = vpop.xlane.xlu0 %33
      %35 = vadd.xlane.f32.xlu0 %v28
      %v36 = vpop.xlane.xlu0 %35
      %v37 = vrcp.pop 128.0
      %v38 = vmul.f32 128.0, %v37
      %v39 = vsub.f32 1.0, %v38
      %v40 = vmul.f32 %v37, %v39
      %v41 = vadd.f32 %v37, %v40
      %vm42 = vweird.f32 %v37
      %v43 = vsel %vm42, %v37, %v41
      %v44 = vmul.f32 %v30, %v43
      %v45 = vmul.f32 %v32, %v43
      %v46 = vmul.f32 %v34, %v43
      %v47 = vmul.f32 %v36, %v43
      %v48 = vsub.f32 %v25, %v44
      %v49 = vsub.f32 %v26, %v45
      %v50 = vsub.f32 %v27, %v46
      %v51 = vsub.f32 %v28, %v47
      %v52 = vmul.f32 %v48, %v48
      %v53 = vmul.f32 %v49, %v49
      %v54 = vmul.f32 %v50, %v50
      %v55 = vmul.f32 %v51, %v51
      %56 = vadd.xlane.f32.xlu0 %v52
      %v57 = vpop.xlane.xlu0 %56
      %58 = vadd.xlane.f32.xlu0 %v53
      %v59 = vpop.xlane.xlu0 %58
      %60 = vadd.xlane.f32.xlu0 %v54
      %v61 = vpop.xlane.xlu0 %60
      %62 = vadd.xlane.f32.xlu0 %v55
      %v63 = vpop.xlane.xlu0 %62
      %v64 = vmul.f32 %v57, %v43
      %v65 = vmul.f32 %v59, %v43
      %v66 = vmul.f32 %v61, %v43
      %v67 = vmul.f32 %v63, %v43
      %v68 = vadd.f32 %v64, 1e-05
      %v69 = vadd.f32 %v65, 1e-05
      %v70 = vadd.f32 %v66, 1e-05
      %v71 = vadd.f32 %v67, 1e-05
      %v72 = vrsqrt.pop %v68
      %v73 = vmul.f32 %v72, %v68
      %v74 = vmul.f32 %v73, %v72
      %v75 = vmul.f32 0.5, %v74
      %v76 = vsub.f32 1.5, %v75
      %v77 = vmul.f32 %v72, %v76
      %vm78 = vweird.f32 %v68
      %vm79 = vweird.f32 %v72
      %vm80 = vmor %vm78, %vm79
      %v81 = vsel %vm80, %v72, %v77
      %v82 = vrsqrt.pop %v69
      %v83 = vmul.f32 %v82, %v69
      %v84 = vmul.f32 %v83, %v82
      %v85 = vmul.f32 0.5, %v84
      %v86 = vsub.f32 1.5, %v85
      %v87 = vmul.f32 %v82, %v86
      %vm88 = vweird.f32 %v69
      %vm89 = vweird.f32 %v82
      %vm90 = vmor %vm88, %vm89
      %v91 = vsel %vm90, %v82, %v87
      %v92 = vrsqrt.pop %v70
      %v93 = vmul.f32 %v92, %v70
      %v94 = vmul.f32 %v93, %v92
      %v95 = vmul.f32 0.5, %v94
      %v96 = vsub.f32 1.5, %v95
      %v97 = vmul.f32 %v92, %v96
      %vm98 = vweird.f32 %v70
      %vm99 = vweird.f32 %v92
      %vm100 = vmor %vm98, %vm99
      %v101 = vsel %vm100, %v92, %v97
      %v102 = vrsqrt.pop %v71
      %v103 = vmul.f32 %v102, %v71
      %v104 = vmul.f32 %v103, %v102
      %v105 = vmul.f32 0.5, %v104
      %v106 = vsub.f32 1.5, %v105
      %v107 = vmul.f32 %v102, %v106
      %vm108 = vweird.f32 %v71
      %vm109 = vweird.f32 %v102
      %vm110 = vmor %vm108, %vm109
      %v111 = vsel %vm110, %v102, %v107
      %v112 = vmul.f32 %v48, %v81
      %v113 = vmul.f32 %v49, %v91
      %v114 = vmul.f32 %v50, %v101
      %v115 = vmul.f32 %v51, %v111
      %v116 = vld [vmem:[%s1] sm:$0x1]
      %v118 = vperm.slane %v116, 0
      %v120 = vmul.f32 %v112, %v118
      %v121 = vmul.f32 %v113, %v118
      %v122 = vmul.f32 %v114, %v118
      %v123 = vmul.f32 %v115, %v118
      %v124 = vld [vmem:[%s2] sm:$0x1]
      %v126 = vperm.slane %v124, 0
      %v128 = vadd.f32 %v120, %v126
      %v129 = vadd.f32 %v121, %v126
      %v130 = vadd.f32 %v122, %v126
      %v131 = vadd.f32 %v123, %v126
      %132 = vst [vmem:[#allocation2] sm:$0xff] %v128
      %133 = vst [vmem:[#allocation2 + $0x8] sm:$0xff] %v129
      %134 = vst [vmem:[#allocation2 + $0x10] sm:$0xff] %v130
      %135 = vst [vmem:[#allocation2 + $0x18] sm:$0xff] %v131
    $region25: #{pre_norm.1} parent=1 // pred_fallthru
      _
    %v136 = vld [vmem:[#allocation2] sm:$0xff]
    %v137 = vld [vmem:[#allocation2 + $0x8] sm:$0xff]
    %v138 = vld [vmem:[#allocation2 + $0x10] sm:$0xff]
    %v139 = vld [vmem:[#allocation2 + $0x18] sm:$0xff]
    %v140 = vld [vmem:[%s3] sm:$0xff]
    %v141 = vld [vmem:[%s3 + $0x8] sm:$0xff]
    %v142 = vld [vmem:[%s3 + $0x10] sm:$0xff]
    %v143 = vld [vmem:[%s3 + $0x18] sm:$0xff]
    %v144 = vld [vmem:[%s3 + $0x20] sm:$0xff]
    %v145 = vld [vmem:[%s3 + $0x28] sm:$0xff]
    %v146 = vld [vmem:[%s3 + $0x30] sm:$0xff]
    %v147 = vld [vmem:[%s3 + $0x38] sm:$0xff]
    %v148 = vld [vmem:[%s3 + $0x40] sm:$0xff]
    %v149 = vld [vmem:[%s3 + $0x48] sm:$0xff]
    %v150 = vld [vmem:[%s3 + $0x50] sm:$0xff]
    %v151 = vld [vmem:[%s3 + $0x58] sm:$0xff]
    %v152 = vld [vmem:[%s3 + $0x60] sm:$0xff]
    %v153 = vld [vmem:[%s3 + $0x68] sm:$0xff]
    %v154 = vld [vmem:[%s3 + $0x70] sm:$0xff]
    %v155 = vld [vmem:[%s3 + $0x78] sm:$0xff]
    %v156 = vld [vmem:[%s4] sm:$0x1]
    %v158 = vperm.slane %v156, 0
    %160 = vmatpush.msra.mxu0 %v155
    %161 = vmatpush.msra.mxu0 %v154
    %162 = vmatpush.msra.mxu0 %v153
    %163 = vmatpush.msra.mxu0 %v152
    %164 = vmatpush.msra.mxu0 %v151
    %165 = vmatpush.msra.mxu0 %v150
    %166 = vmatpush.msra.mxu0 %v149
    %167 = vmatpush.msra.mxu0 %v148
    %168 = vmatpush.msra.mxu0 %v147
    %169 = vmatpush.msra.mxu0 %v146
    %170 = vmatpush.msra.mxu0 %v145
    %171 = vmatpush.msra.mxu0 %v144
    %172 = vmatpush.msra.mxu0 %v143
    %173 = vmatpush.msra.mxu0 %v142
    %174 = vmatpush.msra.mxu0 %v141
    %175 = vmatpush.msra.mxu0 %v140
    %176 = vmatmul.f32.gmra.mxu0 %v136
    %v177 = vpop.f32.mrf.mxu0
    %v178 = vadd.f32 %v158, %v177
    %179 = vmatmul.f32.gmra.mxu0 %v137
    %v180 = vpop.f32.mrf.mxu0
    %v181 = vadd.f32 %v158, %v180
    %182 = vmatmul.f32.gmra.mxu0 %v138
    %v183 = vpop.f32.mrf.mxu0
    %v184 = vadd.f32 %v158, %v183
    %185 = vmatmul.f32.gmra.mxu0 %v139
    %v186 = vpop.f32.mrf.mxu0
    %v187 = vadd.f32 %v158, %v186
    %188 = vdwg.mxu0
    %189 = vst [vmem:[#allocation3] sm:$0xff] %v178
    %190 = vst [vmem:[#allocation3 + $0x8] sm:$0xff] %v181
    %191 = vst [vmem:[#allocation3 + $0x10] sm:$0xff] %v184
    %192 = vst [vmem:[#allocation3 + $0x18] sm:$0xff] %v187
    // Predicated region
    $region26: #{pre_norm.1} parent=1 // pred_check
      _
    $region27: #{pre_norm.1} parent=1 // pred_check_branch
      %194 = sbr.rel (0) target = $region29
    $region28: #{pre_norm.1} parent=1 // pred_region
      %196 = vsyncadd [#allocation4], 0
      %s197 = sshll.u32 [#allocation3], 4
      %s198 = int_to_ptr.vmem [resolvable:$true] %s197
      %s199 = sshll.u32 %s5, 4
      %s200 = int_to_ptr.hbm [resolvable:$true] %s199
      %205 = dma.vmem_to_hbm [thread:$0]  %s198, 512, %s200, [#allocation4], 128, 128, 8
    $region29: #{pre_norm.1} parent=1 // pred_fallthru
      _
    // Predicated region
    $region30: #{pre_norm.1} parent=1 // pred_check
      _
    $region31: #{pre_norm.1} parent=1 // pred_check_branch
      %207 = sbr.rel (0) target = $region33
    $region32: #{pre_norm.1} parent=1 // pred_region
      %209 = dma.done [#allocation4], 512
    $region33: #{pre_norm.1} parent=1 // pred_fallthru
      _
    %210 = vsyncpa [#allocation4], 1

</llo_original>
